<compile_context>
chip_gen: v7x
topology: tpu7x:2x2x1
jax: 0.10.0
libtpu: 0.0.40
codegen_flags: <defaults>
</compile_context>

<pallas_src>
import functools
import math

import jax
import jax.numpy as jnp
from jax.experimental import pallas as pl
from jax.experimental.pallas import tpu as pltpu


_LANE = 128
_MAX_LANE_WIDTH = 2048                 # widest lane-dense slab tried (128-mult)
_SPLIT_MIN_BYTES = 2 * 1024 * 1024     # above this, force >=2 blocks (v7x 2 TCs)


def _round_up(x, m):
    return -(-x // m) * m


def _sublane_pack(dtype):
    """Rows per packed sublane group: 8 (f32), 16 (bf16/f16), 32 (int8/fp8)."""
    itemsize = jnp.dtype(dtype).itemsize
    return 8 * max(4 // max(itemsize, 1), 1)


def _gen_params():
    """Generation-aware (block_bytes, vmem_limit_bytes) with a safe fallback."""
    vmem_bytes = None
    try:
        vmem_bytes = int(pltpu.get_tpu_info().vmem_capacity_bytes)
    except Exception:
        pass
    if vmem_bytes is not None and vmem_bytes >= 96 * 1024 * 1024:
        # v5e / v6e: 128 MiB physical VMEM -> 16 MiB blocks, 4 bufs = 64 MiB.
        return 16 * 1024 * 1024, 80 * 1024 * 1024
    # v7x (64 MiB VMEM) or unknown: 8 MiB blocks, 4 bufs = 32 MiB working set.
    return 8 * 1024 * 1024, 48 * 1024 * 1024


def _offset_relu_kernel_const(x_ref, o_ref, *, offset):
    # `offset` is a compile-time Python scalar (fixed module parameter).
    o_ref[...] = jnp.maximum(x_ref[...] - offset, 0).astype(o_ref.dtype)


def _offset_relu_kernel_smem(offset_ref, x_ref, o_ref):
    # offset_ref: (1, 1) 32-bit scalar in SMEM (traced / learned offset).
    # Subtraction happens in the promoted dtype; result cast to x's dtype.
    o_ref[...] = jnp.maximum(x_ref[...] - offset_ref[0, 0], 0).astype(o_ref.dtype)


def _plan_2d_view(n, sublane):
    """Lane-dense (R, C) view of the flat element stream (C a 128-multiple)."""
    best = None
    for c in (_MAX_LANE_WIDTH, 1024, 512, 256, _LANE):
        if n % c == 0:
            if best is None:
                best = c
            if n // c >= sublane:          # prefer fully-packed sublanes
                return n // c, c
    if best is not None:
        return n // best, best
    return None                            # numel not a multiple of 128


def _plan_rows(r, c, itemsize, sublane, block_bytes):
    """Row-block size: sublane-aligned, ~block_bytes, >=2 blocks if big."""
    rows_budget = (block_bytes // max(c * itemsize, 1)) // sublane * sublane
    rows_budget = max(rows_budget, sublane)
    tr = r if r <= rows_budget else rows_budget
    if r * c * itemsize > _SPLIT_MIN_BYTES and pl.cdiv(r, tr) < 2:
        half = _round_up(-(-r // 2), sublane)     # ceil(r/2), sublane-aligned
        if half < r:
            tr = min(tr, half)                    # guarantee >=2 row blocks
    return tr


def _plan_1d_block(n, itemsize, block_bytes):
    """Wide 1-D block (128-multiple or full extent), masked tail, >=2 if big."""
    max_elems = max((block_bytes // max(itemsize, 1)) // _LANE * _LANE, _LANE)
    b = n if n <= max_elems else max_elems
    if n * itemsize > _SPLIT_MIN_BYTES and pl.cdiv(n, b) < 2:
        half = _round_up(-(-n // 2), _LANE)
        if half < n:
            b = min(b, half)
    return b


def offset_relu(x, offset, *, donate_input=False):
    """y = max(0, x - offset), elementwise, via a Pallas TPU kernel."""
    orig_shape = x.shape
    n = math.prod(orig_shape) if orig_shape else 1
    if n == 0:
        return x                                   # zero-size: nothing to do

    itemsize = jnp.dtype(x.dtype).itemsize
    sublane = _sublane_pack(x.dtype)
    block_bytes, vmem_limit = _gen_params()

    plan = _plan_2d_view(n, sublane)
    if plan is not None:
        r, c = plan
        xv = x.reshape(r, c)                       # layout-preserving reshape
        tr = _plan_rows(r, c, itemsize, sublane, block_bytes)
        grid = (pl.cdiv(r, tr),)
        block = pl.BlockSpec((tr, c), lambda i: (i, 0))
    else:
        # numel not a multiple of 128: flat 1-D view with a wide 128-multiple
        # (or full-extent) block and a masked tail -- never a narrow lane dim.
        xv = x.reshape(n)
        b = _plan_1d_block(n, itemsize, block_bytes)
        grid = (pl.cdiv(n, b),)
        block = pl.BlockSpec((b,), lambda i: (i,))

    if isinstance(offset, (int, float)):
        # Static module parameter: bake it in as a constant.
        kernel = functools.partial(_offset_relu_kernel_const, offset=offset)
        in_specs = [block]
        args = (xv,)
        aliases = {0: 0} if donate_input else {}
    else:
        # Traced / learned offset: one 32-bit scalar staged into SMEM.
        off = jnp.asarray(offset)
        smem_dtype = jnp.int32 if jnp.issubdtype(off.dtype, jnp.integer) else jnp.float32
        off = off.astype(smem_dtype).reshape(1, 1)
        kernel = _offset_relu_kernel_smem
        in_specs = [pl.BlockSpec(memory_space=pltpu.SMEM), block]
        args = (off, xv)
        aliases = {1: 0} if donate_input else {}

    out = pl.pallas_call(
        kernel,
        out_shape=jax.ShapeDtypeStruct(xv.shape, xv.dtype),
        grid=grid,
        in_specs=in_specs,
        out_specs=block,
        input_output_aliases=aliases,
        compiler_params=pltpu.CompilerParams(
            dimension_semantics=("parallel",),
            vmem_limit_bytes=vmem_limit,
        ),
    )(*args)

    return out.reshape(orig_shape)


if __name__ == "__main__":
    key = jax.random.PRNGKey(0)
    # Small NCHW-like activation tensor (batch=2, channels=4, spatial=16x16).
    x = jax.random.normal(key, (2, 4, 16, 16), dtype=jnp.float32)
    offset = 0.1   # OffsetReLU(offset=0.1): fixed module parameter

    # Static-offset path (matches the reference module).
    y = jax.block_until_ready(offset_relu(x, offset))
    y_ref = jnp.maximum(jnp.zeros_like(x), x - offset)
    assert y.shape == x.shape and y.dtype == x.dtype
    assert jnp.allclose(y, y_ref, atol=1e-6, rtol=1e-6)

    # Traced-offset path (SMEM scalar).
    y2 = jax.block_until_ready(offset_relu(x, jnp.float32(0.1)))
    assert jnp.allclose(y2, y_ref, atol=1e-6, rtol=1e-6)

    # Non-128-divisible element count -> flat 1-D lane-dense path (no narrow dim).
    x3 = jax.random.normal(jax.random.PRNGKey(1), (3, 5, 7), dtype=jnp.float32)
    y3 = jax.block_until_ready(offset_relu(x3, offset))
    assert jnp.allclose(y3, jnp.maximum(jnp.zeros_like(x3), x3 - offset),
                        atol=1e-6, rtol=1e-6)

    # bf16 activations (16-row sublane packing path).
    x4 = jax.random.normal(jax.random.PRNGKey(2), (8, 32), dtype=jnp.bfloat16)
    y4 = jax.block_until_ready(offset_relu(x4, offset))
    y4_ref = jnp.maximum(jnp.zeros_like(x4), x4 - offset)
    assert y4.dtype == x4.dtype
    assert jnp.allclose(y4.astype(jnp.float32), y4_ref.astype(jnp.float32),
                        atol=1e-2, rtol=1e-2)

    print("KERNEL_OK")
</pallas_src>

<mosaic_0001>
module attributes {stable_mosaic.version = 11 : i64} {
  func.func @_offset_relu_kernel_const(%arg0: i32, %arg1: memref<8x256xf32, #tpu.memory_space<vmem>>, %arg2: memref<8x256xf32, #tpu.memory_space<vmem>>) attributes {dimension_semantics = [#tpu.dimension_semantics<parallel>], iteration_bounds = array<i64: 1>, scalar_prefetch = 0 : i64, scratch_operands = 0 : i64, tpu.core_type = #tpu.core_type<tc>, window_params = [{transform_indices = @transform_0, window_bounds = array<i64: 8, 256>}, {transform_indices = @transform_1, window_bounds = array<i64: 8, 256>}]} {
    %c0 = arith.constant 0 : index
    %c0_0 = arith.constant 0 : index
    %0 = vector.load %arg1[%c0, %c0_0] : memref<8x256xf32, #tpu.memory_space<vmem>>, vector<8x256xf32>
    %cst = arith.constant 1.000000e-01 : f32
    %1 = vector.broadcast %cst : f32 to vector<8x256xf32>
    %2 = arith.subf %0, %1 : vector<8x256xf32>
    %cst_1 = arith.constant 0.000000e+00 : f32
    %3 = vector.broadcast %cst_1 : f32 to vector<8x256xf32>
    %4 = arith.maximumf %2, %3 : vector<8x256xf32>
    %c0_2 = arith.constant 0 : index
    %c0_3 = arith.constant 0 : index
    %5 = vector.load %arg2[%c0_2, %c0_3] : memref<8x256xf32, #tpu.memory_space<vmem>>, vector<8x256xf32>
    tpu.vector_store %arg2[%c0_2, %c0_3], %4 {strides = array<i32>} : memref<8x256xf32, #tpu.memory_space<vmem>>, vector<8x256xf32>,
    return
  }
  func.func @transform_0(%arg0: i32) -> (i32, i32) {
    %c0_i32 = arith.constant 0 : i32
    %c0_i32_0 = arith.constant 0 : i32
    return %arg0, %c0_i32 : i32, i32
  }
  func.func @transform_1(%arg0: i32) -> (i32, i32) {
    %c0_i32 = arith.constant 0 : i32
    %c0_i32_0 = arith.constant 0 : i32
    return %arg0, %c0_i32 : i32, i32
  }
}

</mosaic_0001>

<llo_original>
// kernel: tpu_custom_call.1
$region0: #{tpu_custom_call.1}
  #allocation0 [shape = 'u32[]', space=smem, size = 0x4, offset = 0x4, fixed_abs, tag = 'smem constant byte address 0x4 - core index']
  #allocation1 [shape = 'u32[144,128]{1,0:T(1,128)}', space=vmem, size = 0x12000, scoped, tag = 'internal scratch']
  %s0 = inlined_call_operand.hbm [shape: f32[8,256], index: 0, kind: input, shape index: {}]
  %s1 = inlined_call_operand.hbm [shape: f32[8,256], index: 1, kind: output, shape index: {}]
  %s2 = sld [smem:[#allocation0]]
  $region18: #{tpu_custom_call.1} parent=0
    _
  %s4 = ssub.s32 1, %s2
  %s5 = scalar_select 0, %s4, %s2
  $region1: #{tpu_custom_call.1} parent=0
    #allocation2 [shape = 'u8[8192]{0}', space=vmem, size = 0x2000, scoped, tag = 'input window, operand 0, single buffered']
    #allocation3 [shape = 's32[1]{0}', space=sflag, size = 0x4, scoped, tag = 'scoped memory for tpu_custom_call.1']
    #allocation4 [shape = 's32[1]{0}', space=sflag, size = 0x4, scoped, tag = 'scoped memory for tpu_custom_call.1']
    #allocation5 [shape = 'u8[8192]{0}', space=vmem, size = 0x2000, scoped, tag = 'output window, operand 0, single buffered']
    %6 = vsyncpa [#allocation3], 0
    %7 = vsyncpa [#allocation4], 0
    // Predicated region
    $region2: #{tpu_custom_call.1} parent=1 // pred_check
      _
    $region3: #{tpu_custom_call.1} parent=1 // pred_check_branch
      %9 = sbr.rel (0) target = $region5
    $region4: #{tpu_custom_call.1} parent=1 // pred_region
      %s11 = ssub.s32 256, 256
      %12 = vsyncadd [#allocation3], %s11
      %s14 = sshll.u32 [#allocation2], 4
      %s15 = int_to_ptr.vmem [resolvable:$true] %s14
      %17 = dma.hbm_to_vmem [thread:$0]  %s0, 256, %s15, [#allocation3]
    $region5: #{tpu_custom_call.1} parent=1 // pred_fallthru
      _
    // Predicated region
    $region6: #{tpu_custom_call.1} parent=1 // pred_check
      _
    $region7: #{tpu_custom_call.1} parent=1 // pred_check_branch
      %19 = sbr.rel (0) target = $region9
    $region8: #{tpu_custom_call.1} parent=1 // pred_region
      %20 = dma.done [#allocation3], 256
    $region9: #{tpu_custom_call.1} parent=1 // pred_fallthru
      _
    %v21 = vld [vmem:[#allocation2] sm:$0xff]
    %v22 = vld [vmem:[#allocation2 + $0x8] sm:$0xff]
    %v23 = vsub.f32 %v21, 0.1
    %v24 = vsub.f32 %v22, 0.1
    %v25 = vmax.f32 %v23, 0.0
    %v26 = vmax.f32 %v24, 0.0
    %27 = vst [vmem:[#allocation5] sm:$0xff] %v25
    %28 = vst [vmem:[#allocation5 + $0x8] sm:$0xff] %v26
    // Predicated region
    $region10: #{tpu_custom_call.1} parent=1 // pred_check
      _
    $region11: #{tpu_custom_call.1} parent=1 // pred_check_branch
      %30 = sbr.rel (0) target = $region13
    $region12: #{tpu_custom_call.1} parent=1 // pred_region
      %s32 = ssub.s32 256, 256
      %33 = vsyncadd [#allocation4], %s32
      %s35 = sshll.u32 [#allocation5], 4
      %s36 = int_to_ptr.vmem [resolvable:$true] %s35
      %38 = dma.vmem_to_hbm [thread:$0]  %s36, 256, %s1, [#allocation4]
    $region13: #{tpu_custom_call.1} parent=1 // pred_fallthru
      _
    // Predicated region
    $region14: #{tpu_custom_call.1} parent=1 // pred_check
      _
    $region15: #{tpu_custom_call.1} parent=1 // pred_check_branch
      %40 = sbr.rel (0) target = $region17
    $region16: #{tpu_custom_call.1} parent=1 // pred_region
      %41 = dma.done [#allocation4], 256
    $region17: #{tpu_custom_call.1} parent=1 // pred_fallthru
      _
    %42 = vsyncpa [#allocation3], 1
    %43 = vsyncpa [#allocation4], 1

</llo_original>
